<compile_context>
chip_gen: v5e
topology: v5e:2x2
jax: 0.10.0
libtpu: 0.0.40
codegen_flags: <defaults>
</compile_context>

<pallas_src>
import jax
import jax.numpy as jnp
from jax.experimental import pallas as pl
from jax.experimental.pallas import tpu as pltpu

SUBLANE = 8                          # f32 vreg sublane rows
MAX_TILE_B = 2048                    # upper bound on batch-tile rows
VMEM_TILE_BUDGET = 8 * 1024 * 1024   # per-activation-tile budget (bytes)


def _cdiv(a, b):
    return -(-a // b)


def _round_up(n, m):
    return _cdiv(n, m) * m


def _pick_tile_b(batch, feat, dtype):
    """Batch tile: dtype-aligned sublanes, VMEM-bounded, >= 2 grid steps when the
    batch allows (v7x megacore), minimal ragged-boundary waste."""
    itemsize = jnp.dtype(dtype).itemsize
    align = SUBLANE * max(1, 4 // itemsize)        # 8 rows f32, 16 rows bf16
    cap = (VMEM_TILE_BUDGET // max(feat * itemsize, 1)) // align * align
    cap = max(align, min(MAX_TILE_B, cap))
    if batch <= align:
        return batch                               # one full-batch block (legal at any size)
    n_tiles = max(_cdiv(batch, cap), 2)            # >= 2 steps for v7x's 2 TCs
    return min(_round_up(_cdiv(batch, n_tiles), align), cap)


def pg_forward_kernel(x_ref, w1_ref, b1_ref, w2_ref, b2_ref, o_ref):
    # x_ref: (tile_b, I)  w1_ref: (I, H)  b1_ref: (1, H)
    # w2_ref: (H, O)      b2_ref: (1, O)  o_ref:  (tile_b, O)   -- all native widths
    h = jnp.dot(x_ref[...], w1_ref[...], preferred_element_type=jnp.float32)
    h = jnp.maximum(h + b1_ref[...], 0.0)          # bias + ReLU on the f32 accumulator
    o_ref[...] = (jnp.dot(h.astype(w2_ref.dtype), w2_ref[...],
                          preferred_element_type=jnp.float32) + b2_ref[...])


def pg_reference(x, w1, b1, w2, b2, compute_dtype=jnp.float32):
    """Pure-XLA reference performing the same math as the kernel (f32 accumulation)."""
    cd = compute_dtype
    h = jnp.dot(x.astype(cd), w1.astype(cd), preferred_element_type=jnp.float32) + b1
    h = jnp.maximum(h, 0.0)
    return jnp.dot(h.astype(cd), w2.astype(cd),
                   preferred_element_type=jnp.float32) + b2


def pg_network_forward(x, w1, b1, w2, b2, *, compute_dtype=jnp.bfloat16,
                       use_pallas=True):
    """PGNetwork forward: relu(x @ W1 + b1) @ W2 + b2.

    x: (B, input_size) float32.  Weights stored pre-transposed as
    (in_features, out_features); biases (1, out_features).
    compute_dtype: matmul streaming dtype (bf16 halves HBM traffic; use
    jnp.float32 to match the PyTorch module's numerics exactly).
    Accumulation, bias, ReLU and the output are always f32.
    """
    x = jnp.asarray(x, jnp.float32)   # mirrors torch.from_numpy(...).to(float32)
    B, I = x.shape
    H = w1.shape[1]
    O = w2.shape[1]

    if not use_pallas or B == 0:
        # Honest fast path for tiny batches (B <~ 64) where fixed kernel
        # overhead dominates the actual math.
        return pg_reference(x, w1, b1, w2, b2, compute_dtype)

    cd = jnp.dtype(compute_dtype)
    x_c = x.astype(cd)
    w1_c = jnp.asarray(w1, cd)
    w2_c = jnp.asarray(w2, cd)
    b1_f = jnp.asarray(b1, jnp.float32).reshape(1, H)
    b2_f = jnp.asarray(b2, jnp.float32).reshape(1, O)

    tile_b = _pick_tile_b(B, I, cd)
    grid = (_cdiv(B, tile_b),)

    bytes_accessed = (B * I * cd.itemsize            # x read
                      + I * H * cd.itemsize + H * 4  # W1, b1
                      + H * O * cd.itemsize + O * 4  # W2, b2
                      + B * O * 4)                   # output write
    cost = pl.CostEstimate(flops=2 * B * (I * H + H * O),
                           transcendentals=0,
                           bytes_accessed=bytes_accessed)

    return pl.pallas_call(
        pg_forward_kernel,
        out_shape=jax.ShapeDtypeStruct((B, O), jnp.float32),
        grid=grid,
        in_specs=[
            # batch-tiled activation at native feature width (no padding pass)
            pl.BlockSpec((tile_b, I), lambda i: (i, 0)),
            # grid-invariant weights/biases -> VMEM-resident across the grid
            pl.BlockSpec((I, H), lambda i: (0, 0)),
            pl.BlockSpec((1, H), lambda i: (0, 0)),
            pl.BlockSpec((H, O), lambda i: (0, 0)),
            pl.BlockSpec((1, O), lambda i: (0, 0)),
        ],
        # native output width: ~32x fewer write bytes than padding O to 128 and
        # no post-kernel slice pass (masked vst accepted per review)
        out_specs=pl.BlockSpec((tile_b, O), lambda i: (i, 0)),
        compiler_params=pltpu.CompilerParams(
            dimension_semantics=("parallel",)),
        cost_estimate=cost,
    )(x_c, w1_c, b1_f, w2_c, b2_f)


def init_pg_params(key, input_size, hidden_size, output_size):
    """nn.Linear-style U(-1/sqrt(fan_in), 1/sqrt(fan_in)) init; weights stored as
    (in_features, out_features) == transpose of PyTorch's layout."""
    k1, k2, k3, k4 = jax.random.split(key, 4)
    bound1 = 1.0 / (input_size ** 0.5)
    bound2 = 1.0 / (hidden_size ** 0.5)
    w1 = jax.random.uniform(k1, (input_size, hidden_size), jnp.float32, -bound1, bound1)
    b1 = jax.random.uniform(k2, (1, hidden_size), jnp.float32, -bound1, bound1)
    w2 = jax.random.uniform(k3, (hidden_size, output_size), jnp.float32, -bound2, bound2)
    b2 = jax.random.uniform(k4, (1, output_size), jnp.float32, -bound2, bound2)
    return w1, b1, w2, b2


if __name__ == "__main__":
    # Small shapes consistent with the module: PG on a flat observation vector.
    input_size, hidden_size, output_size = 16, 32, 4

    key = jax.random.PRNGKey(0)
    kx1, kx2, kp = jax.random.split(key, 3)
    w1, b1, w2, b2 = init_pg_params(kp, input_size, hidden_size, output_size)

    # 1) Default bf16-streaming path, ragged batch (50 -> two tiles of 32, boundary masked).
    xa = jax.random.normal(kx1, (50, input_size), jnp.float32)
    out_bf16 = jax.block_until_ready(pg_network_forward(xa, w1, b1, w2, b2))
    ref_bf16 = pg_reference(xa, w1, b1, w2, b2, jnp.bfloat16)
    assert out_bf16.shape == (50, output_size) and out_bf16.dtype == jnp.float32
    assert jnp.allclose(out_bf16, ref_bf16, atol=1e-5, rtol=1e-5)
    # coarse sanity: bf16 streaming stays within bf16-input tolerance of exact f32
    assert jnp.allclose(out_bf16, pg_reference(xa, w1, b1, w2, b2, jnp.float32),
                        atol=1e-1, rtol=1e-1)

    # 2) Exact-f32 path (bit-for-bit the PyTorch module's math), ragged batch of 10.
    xb = jax.random.normal(kx2, (10, input_size), jnp.float32)
    out_f32 = jax.block_until_ready(
        pg_network_forward(xb, w1, b1, w2, b2, compute_dtype=jnp.float32))
    ref_f32 = pg_reference(xb, w1, b1, w2, b2, jnp.float32)
    assert out_f32.shape == (10, output_size)
    assert jnp.allclose(out_f32, ref_f32, atol=1e-5, rtol=1e-5)

    print("KERNEL_OK")
</pallas_src>

<mosaic_0001>
module attributes {stable_mosaic.version = 11 : i64} {
  func.func @pg_forward_kernel(%arg0: i32, %arg1: memref<32x16xbf16, #tpu.memory_space<vmem>>, %arg2: memref<16x32xbf16, #tpu.memory_space<vmem>>, %arg3: memref<1x32xf32, #tpu.memory_space<vmem>>, %arg4: memref<32x4xbf16, #tpu.memory_space<vmem>>, %arg5: memref<1x4xf32, #tpu.memory_space<vmem>>, %arg6: memref<32x4xf32, #tpu.memory_space<vmem>>) attributes {dimension_semantics = [#tpu.dimension_semantics<parallel>], iteration_bounds = array<i64: 2>, scalar_prefetch = 0 : i64, scratch_operands = 0 : i64, tpu.core_type = #tpu.core_type<tc>, window_params = [{transform_indices = @transform_0, window_bounds = array<i64: 32, 16>}, {pipeline_mode = #tpu.pipeline_mode<synchronous>, transform_indices = @transform_1, window_bounds = array<i64: 16, 32>}, {pipeline_mode = #tpu.pipeline_mode<synchronous>, transform_indices = @transform_2, window_bounds = array<i64: 1, 32>}, {pipeline_mode = #tpu.pipeline_mode<synchronous>, transform_indices = @transform_3, window_bounds = array<i64: 32, 4>}, {pipeline_mode = #tpu.pipeline_mode<synchronous>, transform_indices = @transform_4, window_bounds = array<i64: 1, 4>}, {transform_indices = @transform_5, window_bounds = array<i64: 32, 4>}]} {
    %c0 = arith.constant 0 : index
    %c0_0 = arith.constant 0 : index
    %0 = vector.load %arg1[%c0, %c0_0] : memref<32x16xbf16, #tpu.memory_space<vmem>>, vector<32x16xbf16>
    %c0_1 = arith.constant 0 : index
    %c0_2 = arith.constant 0 : index
    %1 = vector.load %arg2[%c0_1, %c0_2] : memref<16x32xbf16, #tpu.memory_space<vmem>>, vector<16x32xbf16>
    %cst = arith.constant dense<0.000000e+00> : vector<32x32xf32>
    %2 = tpu.matmul %0, %1, %cst {dimension_numbers = #tpu.dot_dimension_numbers<[1], [0], [0], [1], [0, 0, 1, 1], [], []>} : vector<32x16xbf16>, vector<16x32xbf16>, vector<32x32xf32> -> vector<32x32xf32>
    %c0_3 = arith.constant 0 : index
    %c0_4 = arith.constant 0 : index
    %3 = vector.load %arg3[%c0_3, %c0_4] : memref<1x32xf32, #tpu.memory_space<vmem>>, vector<1x32xf32>
    %4 = vector.broadcast %3 : vector<1x32xf32> to vector<32x32xf32>
    %5 = arith.addf %2, %4 : vector<32x32xf32>
    %cst_5 = arith.constant 0.000000e+00 : f32
    %6 = vector.broadcast %cst_5 : f32 to vector<32x32xf32>
    %7 = arith.maximumf %5, %6 : vector<32x32xf32>
    %8 = arith.truncf %7 : vector<32x32xf32> to vector<32x32xbf16>
    %c0_6 = arith.constant 0 : index
    %c0_7 = arith.constant 0 : index
    %9 = vector.load %arg4[%c0_6, %c0_7] : memref<32x4xbf16, #tpu.memory_space<vmem>>, vector<32x4xbf16>
    %cst_8 = arith.constant dense<0.000000e+00> : vector<32x4xf32>
    %10 = tpu.matmul %8, %9, %cst_8 {dimension_numbers = #tpu.dot_dimension_numbers<[1], [0], [0], [1], [0, 0, 1, 1], [], []>} : vector<32x32xbf16>, vector<32x4xbf16>, vector<32x4xf32> -> vector<32x4xf32>
    %c0_9 = arith.constant 0 : index
    %c0_10 = arith.constant 0 : index
    %11 = vector.load %arg5[%c0_9, %c0_10] : memref<1x4xf32, #tpu.memory_space<vmem>>, vector<1x4xf32>
    %12 = vector.broadcast %11 : vector<1x4xf32> to vector<32x4xf32>
    %13 = arith.addf %10, %12 : vector<32x4xf32>
    %c0_11 = arith.constant 0 : index
    %c0_12 = arith.constant 0 : index
    %14 = vector.load %arg6[%c0_11, %c0_12] : memref<32x4xf32, #tpu.memory_space<vmem>>, vector<32x4xf32>
    tpu.vector_store %arg6[%c0_11, %c0_12], %13 {strides = array<i32>} : memref<32x4xf32, #tpu.memory_space<vmem>>, vector<32x4xf32>,
    return
  }
  func.func @transform_0(%arg0: i32) -> (i32, i32) {
    %c0_i32 = arith.constant 0 : i32
    %c0_i32_0 = arith.constant 0 : i32
    return %arg0, %c0_i32 : i32, i32
  }
  func.func @transform_1(%arg0: i32) -> (i32, i32) {
    %c0_i32 = arith.constant 0 : i32
    %c0_i32_0 = arith.constant 0 : i32
    %c0_i32_1 = arith.constant 0 : i32
    return %c0_i32, %c0_i32_0 : i32, i32
  }
  func.func @transform_2(%arg0: i32) -> (i32, i32) {
    %c0_i32 = arith.constant 0 : i32
    %c0_i32_0 = arith.constant 0 : i32
    %c0_i32_1 = arith.constant 0 : i32
    return %c0_i32, %c0_i32_0 : i32, i32
  }
  func.func @transform_3(%arg0: i32) -> (i32, i32) {
    %c0_i32 = arith.constant 0 : i32
    %c0_i32_0 = arith.constant 0 : i32
    %c0_i32_1 = arith.constant 0 : i32
    return %c0_i32, %c0_i32_0 : i32, i32
  }
  func.func @transform_4(%arg0: i32) -> (i32, i32) {
    %c0_i32 = arith.constant 0 : i32
    %c0_i32_0 = arith.constant 0 : i32
    %c0_i32_1 = arith.constant 0 : i32
    return %c0_i32, %c0_i32_0 : i32, i32
  }
  func.func @transform_5(%arg0: i32) -> (i32, i32) {
    %c0_i32 = arith.constant 0 : i32
    %c0_i32_0 = arith.constant 0 : i32
    return %arg0, %c0_i32 : i32, i32
  }
}

</mosaic_0001>

<llo_original>
// kernel: tpu_custom_call.1
$region0: #{tpu_custom_call.1}
  #allocation0 [shape = 'u32[]', space=smem, size = 0x4, offset = 0x4, fixed_abs, tag = 'smem constant byte address 0x4 - core index']
  #allocation1 [shape = 'u32[72,128]{1,0:T(1,128)}', space=vmem, size = 0x9000, scoped, tag = 'internal scratch']
  %s0 = inlined_call_operand.vmem [shape: bf16[50,16], index: 0, kind: input, shape index: {}]
  %s1 = inlined_call_operand.vmem [shape: bf16[16,32], index: 1, kind: input, shape index: {}]
  %s2 = inlined_call_operand.vmem [shape: f32[1,32], index: 2, kind: input, shape index: {}]
  %s3 = inlined_call_operand.vmem [shape: bf16[32,4], index: 3, kind: input, shape index: {}]
  %s4 = inlined_call_operand.vmem [shape: f32[1,4], index: 4, kind: input, shape index: {}]
  %s5 = inlined_call_operand.vmem [shape: f32[50,4], index: 5, kind: output, shape index: {}]
  %s6 = sld [smem:[#allocation0]]
  $region101: #{tpu_custom_call.1} parent=0
    _
  %s8 = ssub.s32 1, %s6
  %s9 = scalar_select 0, %s8, %s6
  $region1: #{tpu_custom_call.1} parent=0
    #allocation2 [shape = 'u8[32768]{0}', space=vmem, size = 0x8000, scoped, tag = 'output window, operand 0']
    loop: start=0, step=1, limit=4
    $region2: #{tpu_custom_call.1} parent=1 // loop_pre_header
      _
    $region3: #{tpu_custom_call.1} parent=1 // loop_header
      %s11 = sphi 0, %s15
      %p12 = scmp.ge.s32.totalorder %s11, 4
      %s21 = sphi 0, %s23
      %s24 = sphi 0, %s21
      %s25 = sphi 0, %s24
      %s41 = sphi 0, %s25
      %s45 = sphi 0, %s45
      %s47 = sphi 0, %s45
      %s48 = sphi 0, %s47
      %s62 = sphi 0, %s48
      %s66 = sphi 0, %s66
      %s68 = sphi 0, %s66
      %s69 = sphi 0, %s68
      %s83 = sphi 0, %s69
      %s87 = sphi 0, %s87
      %s89 = sphi 0, %s87
      %s90 = sphi 0, %s89
      %s104 = sphi 0, %s90
      %s108 = sphi 0, %s108
      %s110 = sphi 0, %s108
      %s111 = sphi 0, %s110
      %s125 = sphi 0, %s111
      %s131 = sphi 0, %s133
      %s134 = sphi 0, %s131
      %s135 = sphi 0, %s134
      %s151 = sphi 0, %s135
    $region4: #{tpu_custom_call.1} parent=1 // loop_header_branch
      %14 = sbr.rel (%p12) target = $region8
    $region5: #{tpu_custom_call.1} parent=1 // loop_body
      %s16 = ssub.s32 %s11, 1
      %s17 = ssub.s32 %s11, 2
      %s18 = sadd.s32 %s11, 1
      %s19 = ssub.s32 %s11, %s18
      %p20 = scmp.eq.s32.totalorder %s19, 0
      %s22 = sadd.s32 %s21, 1
      %s23 = scalar_select %p20, %s21, %s22
      %p26 = pneg %p20
      %p27 = scmp.eq.s32.totalorder %s11, 1
      %p28 = por %p26, %p27
      %p29 = scmp.ne.s32.totalorder %s21, %s24
      %p30 = scmp.eq.s32.totalorder %s11, 0
      %p31 = por %p29, %p30
      %p32 = scmp.ne.s32.totalorder %s21, %s24
      %p33 = scmp.eq.s32.totalorder %s16, 1
      %p34 = por %p32, %p33
      %p35 = scmp.ne.s32.totalorder %s24, %s25
      %p36 = scmp.eq.s32.totalorder %s16, 0
      %p37 = por %p35, %p36
      %p38 = scmp.ne.s32.totalorder %s24, %s25
      %p39 = scmp.eq.s32.totalorder %s17, 1
      %p40 = por %p38, %p39
      %p42 = scmp.ne.s32.totalorder %s25, %s41
      %p43 = scmp.eq.s32.totalorder %s17, 0
      %p44 = por %p42, %p43
      %s46 = sadd.s32 %s45, 1
      %p49 = scmp.eq.s32.totalorder %s11, 1
      %p50 = scmp.ne.s32.totalorder %s45, %s47
      %p51 = scmp.eq.s32.totalorder %s11, 0
      %p52 = por %p50, %p51
      %p53 = scmp.ne.s32.totalorder %s45, %s47
      %p54 = scmp.eq.s32.totalorder %s16, 1
      %p55 = por %p53, %p54
      %p56 = scmp.ne.s32.totalorder %s47, %s48
      %p57 = scmp.eq.s32.totalorder %s16, 0
      %p58 = por %p56, %p57
      %p59 = scmp.ne.s32.totalorder %s47, %s48
      %p60 = scmp.eq.s32.totalorder %s17, 1
      %p61 = por %p59, %p60
      %p63 = scmp.ne.s32.totalorder %s48, %s62
      %p64 = scmp.eq.s32.totalorder %s17, 0
      %p65 = por %p63, %p64
      %s67 = sadd.s32 %s66, 1
      %p70 = scmp.eq.s32.totalorder %s11, 1
      %p71 = scmp.ne.s32.totalorder %s66, %s68
      %p72 = scmp.eq.s32.totalorder %s11, 0
      %p73 = por %p71, %p72
      %p74 = scmp.ne.s32.totalorder %s66, %s68
      %p75 = scmp.eq.s32.totalorder %s16, 1
      %p76 = por %p74, %p75
      %p77 = scmp.ne.s32.totalorder %s68, %s69
      %p78 = scmp.eq.s32.totalorder %s16, 0
      %p79 = por %p77, %p78
      %p80 = scmp.ne.s32.totalorder %s68, %s69
      %p81 = scmp.eq.s32.totalorder %s17, 1
      %p82 = por %p80, %p81
      %p84 = scmp.ne.s32.totalorder %s69, %s83
      %p85 = scmp.eq.s32.totalorder %s17, 0
      %p86 = por %p84, %p85
      %s88 = sadd.s32 %s87, 1
      %p91 = scmp.eq.s32.totalorder %s11, 1
      %p92 = scmp.ne.s32.totalorder %s87, %s89
      %p93 = scmp.eq.s32.totalorder %s11, 0
      %p94 = por %p92, %p93
      %p95 = scmp.ne.s32.totalorder %s87, %s89
      %p96 = scmp.eq.s32.totalorder %s16, 1
      %p97 = por %p95, %p96
      %p98 = scmp.ne.s32.totalorder %s89, %s90
      %p99 = scmp.eq.s32.totalorder %s16, 0
      %p100 = por %p98, %p99
      %p101 = scmp.ne.s32.totalorder %s89, %s90
      %p102 = scmp.eq.s32.totalorder %s17, 1
      %p103 = por %p101, %p102
      %p105 = scmp.ne.s32.totalorder %s90, %s104
      %p106 = scmp.eq.s32.totalorder %s17, 0
      %p107 = por %p105, %p106
      %s109 = sadd.s32 %s108, 1
      %p112 = scmp.eq.s32.totalorder %s11, 1
      %p113 = scmp.ne.s32.totalorder %s108, %s110
      %p114 = scmp.eq.s32.totalorder %s11, 0
      %p115 = por %p113, %p114
      %p116 = scmp.ne.s32.totalorder %s108, %s110
      %p117 = scmp.eq.s32.totalorder %s16, 1
      %p118 = por %p116, %p117
      %p119 = scmp.ne.s32.totalorder %s110, %s111
      %p120 = scmp.eq.s32.totalorder %s16, 0
      %p121 = por %p119, %p120
      %p122 = scmp.ne.s32.totalorder %s110, %s111
      %p123 = scmp.eq.s32.totalorder %s17, 1
      %p124 = por %p122, %p123
      %p126 = scmp.ne.s32.totalorder %s111, %s125
      %p127 = scmp.eq.s32.totalorder %s17, 0
      %p128 = por %p126, %p127
      %s129 = ssub.s32 %s11, %s18
      %p130 = scmp.eq.s32.totalorder %s129, 0
      %s132 = sadd.s32 %s131, 1
      %s133 = scalar_select %p130, %s131, %s132
      %p136 = pneg %p130
      %p137 = scmp.eq.s32.totalorder %s11, 1
      %p138 = por %p136, %p137
      %p139 = scmp.ne.s32.totalorder %s131, %s134
      %p140 = scmp.eq.s32.totalorder %s11, 0
      %p141 = por %p139, %p140
      %p142 = scmp.ne.s32.totalorder %s131, %s134
      %p143 = scmp.eq.s32.totalorder %s16, 1
      %p144 = por %p142, %p143
      %p145 = scmp.ne.s32.totalorder %s134, %s135
      %p146 = scmp.eq.s32.totalorder %s16, 0
      %p147 = por %p145, %p146
      %p148 = scmp.ne.s32.totalorder %s134, %s135
      %p149 = scmp.eq.s32.totalorder %s17, 1
      %p150 = por %p148, %p149
      %p152 = scmp.ne.s32.totalorder %s135, %s151
      %p153 = scmp.eq.s32.totalorder %s17, 0
      %p154 = por %p152, %p153
      %p155 = scmp.le.s32.totalorder 1, %s11
      %p156 = scmp.lt.s32.totalorder %s11, 3
      %p157 = pnand %p155, %p156
      %p158 = pneg %p157
      // Predicated region
      $region9: #{tpu_custom_call.1} parent=5 // pred_check
        _
      $region10: #{tpu_custom_call.1} parent=5 // pred_check_branch
        %160 = sbr.rel (%p157) target = $region12
      $region11: #{tpu_custom_call.1} parent=5 // pred_region
        %s161 = ssub.s32 %s11, 1
        // Predicated region
        $region13: #{tpu_custom_call.1} parent=11 // pred_check
          %p162 = pneg %p58
        $region14: #{tpu_custom_call.1} parent=11 // pred_check_branch
          %164 = sbr.rel (%p162) target = $region16
        $region15: #{tpu_custom_call.1} parent=11 // pred_region
          _
        $region16: #{tpu_custom_call.1} parent=11 // pred_fallthru
          _
        // Predicated region
        $region17: #{tpu_custom_call.1} parent=11 // pred_check
          %p165 = pneg %p79
        $region18: #{tpu_custom_call.1} parent=11 // pred_check_branch
          %167 = sbr.rel (%p165) target = $region20
        $region19: #{tpu_custom_call.1} parent=11 // pred_region
          _
        $region20: #{tpu_custom_call.1} parent=11 // pred_fallthru
          _
        // Predicated region
        $region21: #{tpu_custom_call.1} parent=11 // pred_check
          %p168 = pneg %p100
        $region22: #{tpu_custom_call.1} parent=11 // pred_check_branch
          %170 = sbr.rel (%p168) target = $region24
        $region23: #{tpu_custom_call.1} parent=11 // pred_region
          _
        $region24: #{tpu_custom_call.1} parent=11 // pred_fallthru
          _
        // Predicated region
        $region25: #{tpu_custom_call.1} parent=11 // pred_check
          %p171 = pneg %p121
        $region26: #{tpu_custom_call.1} parent=11 // pred_check_branch
          %173 = sbr.rel (%p171) target = $region28
        $region27: #{tpu_custom_call.1} parent=11 // pred_region
          _
        $region28: #{tpu_custom_call.1} parent=11 // pred_fallthru
          _
      $region12: #{tpu_custom_call.1} parent=5 // pred_fallthru
        _
      %p174 = scmp.lt.s32.totalorder %s11, 2
      // Predicated region
      $region29: #{tpu_custom_call.1} parent=5 // pred_check
        %p175 = pneg %p174
      $region30: #{tpu_custom_call.1} parent=5 // pred_check_branch
        %177 = sbr.rel (%p175) target = $region32
      $region31: #{tpu_custom_call.1} parent=5 // pred_region
        // Predicated region
        $region33: #{tpu_custom_call.1} parent=31 // pred_check
          %p178 = pneg %p31
        $region34: #{tpu_custom_call.1} parent=31 // pred_check_branch
          %180 = sbr.rel (%p178) target = $region36
        $region35: #{tpu_custom_call.1} parent=31 // pred_region
          %s181 = smul.u32 4, %s11
          %s182 = ssub.s32 7, %s181
          %p183 = scmp.lt.s32.totalorder %s182, 4
          %s184 = scalar_select %p183, %s182, 4
          %s185 = smul.u32 4, %s184
          %p186 = scmp.lt.s32.totalorder %s181, 6
          %s187 = scalar_select %p186, %s181, 6
          %s188 = smul.addr %s187, 4
          %s189 = scalar_lea.vmem %s0, %s188
          %s190 = smul.u32 4, %s11
          %s191 = ssub.s32 7, %s190
          %p192 = scmp.lt.s32.totalorder %s191, 4
          %s193 = scalar_select %p192, %s191, 4
          %s194 = smul.u32 4, %s193
        $region36: #{tpu_custom_call.1} parent=31 // pred_fallthru
          _
      $region32: #{tpu_custom_call.1} parent=5 // pred_fallthru
        _
      %p195 = scmp.le.s32.totalorder 1, %s11
      %p196 = scmp.lt.s32.totalorder %s11, 3
      %p197 = pnand %p195, %p196
      %p198 = pneg %p197
      // Predicated region
      $region37: #{tpu_custom_call.1} parent=5 // pred_check
        _
      $region38: #{tpu_custom_call.1} parent=5 // pred_check_branch
        %200 = sbr.rel (%p197) target = $region40
      $region39: #{tpu_custom_call.1} parent=5 // pred_region
        %s201 = ssub.s32 %s11, 1
        %s202 = smul.u32 4, %s16
        %s203 = ssub.s32 7, %s202
        %p204 = scmp.lt.s32.totalorder %s203, 4
        %s205 = scalar_select %p204, %s203, 4
        %s206 = smul.u32 4, %s205
        %p207 = scmp.lt.s32.totalorder %s202, 6
        %s208 = scalar_select %p207, %s202, 6
        %s209 = smul.addr %s208, 4
        %s210 = scalar_lea.vmem %s0, %s209
        %p211 = pneg %p37
        %p212 = pneg %p34
        %p213 = pneg %p58
        %p214 = pneg %p55
        %p215 = pneg %p79
        %p216 = pneg %p76
        %p217 = pneg %p100
        %p218 = pneg %p97
        %p219 = pneg %p121
        %p220 = pneg %p118
        %p221 = pneg %p147
        %p222 = pneg %p144
        %s223 = sand.u32 %s134, 1
        %s224 = sand.u32 %s134, 1
        %s225 = smul.addr %s224, 32
        %s226 = scalar_lea.vmem [#allocation2], %s225
        %s227 = smul.u32 4, %s16
        %s228 = ssub.s32 7, %s227
        %p229 = scmp.lt.s32.totalorder %s228, 4
        %s230 = scalar_select %p229, %s228, 4
        %s231 = smul.u32 4, %s230
        %p232 = scmp.lt.s32.totalorder %s227, 6
        %s233 = scalar_select %p232, %s227, 6
        %s234 = smul.addr %s233, 4
        %s235 = scalar_lea.vmem %s0, %s234
        %s236 = smul.u32 4, %s16
        %s237 = ssub.s32 7, %s236
        %p238 = scmp.lt.s32.totalorder %s237, 4
        %s239 = scalar_select %p238, %s237, 4
        %s240 = smul.u32 4, %s239
        %s241 = smul.u32 4, %s16
        %s242 = ssub.s32 7, %s241
        %p243 = scmp.lt.s32.totalorder %s242, 4
        %s244 = scalar_select %p243, %s242, 4
        %s245 = smul.u32 8, %s244
        %v247 = vld [vmem:[%s235] sm:$0xf]
        %v248 = vld [vmem:[%s235 + $0x4] sm:$0xf]
        %v249 = vld [vmem:[%s235 + $0x8] sm:$0xf]
        %v250 = vld [vmem:[%s235 + $0xc] sm:$0xf]
        %v251 = vld [vmem:[%s1] sm:$0xf]
        %v252 = vld [vmem:[%s1 + $0x4] sm:$0xf]
        %v253 = vld [vmem:[%s2] sm:$0x1]
        %v255 = vperm.slane %v253, 0
        %v261 = vunpack.c.l.b16 %v247
        %v262 = vunpack.c.l.b16 %v248
        %v263 = vunpack.c.l.b16 %v249
        %v264 = vunpack.c.l.b16 %v250
        %v265 = vpack.c.b16 %v262, %v261
        %v266 = vpack.c.b16 %v264, %v263
        %v269 = vunpack.c.l.b16 %v251
        %v270 = vunpack.c.l.b16 %v252
        %v271 = vpack.c.b16 %v270, %v269
        %vm273 = vcmask 130048
        %v275 = vsel %vm273, %v265, 0
        %v278 = vsel %vm273, %v266, 0
        %280 = vmatpush.bf16.msra.mxu0 0
        %281 = vmatpush.bf16.msra.mxu0 0
        %282 = vmatpush.bf16.msra.mxu0 0
        %283 = vmatpush.bf16.msra.mxu0 0
        %284 = vmatpush.bf16.msra.mxu0 0
        %285 = vmatpush.bf16.msra.mxu0 0
        %286 = vmatpush.bf16.msra.mxu0 0
        %287 = vmatpush.bf16.msra.mxu0 %v271
        %288 = vmatmul.bf16.gmra.mxu0 %v275
        %v289 = vpop.f32.mrf.mxu0
        %v290 = vadd.f32 %v255, %v289
        %v291 = vpop.f32.mrf.mxu0
        %v292 = vadd.f32 %v255, %v291
        %293 = vmatmul.bf16.gmra.mxu0 %v278
        %v294 = vpop.f32.mrf.mxu0
        %v295 = vadd.f32 %v255, %v294
        %v296 = vpop.f32.mrf.mxu0
        %v297 = vadd.f32 %v255, %v296
        %298 = vdwg.mxu0
        %v299 = vmax.f32 %v290, 0.0
        %v300 = vmax.f32 %v292, 0.0
        %v301 = vmax.f32 %v295, 0.0
        %v302 = vmax.f32 %v297, 0.0
        %v303 = vpack.c.bf16 %v300, %v299
        %v304 = vpack.c.bf16 %v302, %v301
        %v305 = vld [vmem:[%s3] sm:$0xf]
        %v306 = vld [vmem:[%s3 + $0x4] sm:$0xf]
        %v307 = vld [vmem:[%s3 + $0x8] sm:$0xf]
        %v308 = vld [vmem:[%s3 + $0xc] sm:$0xf]
        %v309 = vld [vmem:[%s4] sm:$0x1]
        %v311 = vperm.slane %v309, 0
        %v317 = vunpack.c.l.b16 %v305
        %v318 = vunpack.c.l.b16 %v306
        %v319 = vunpack.c.l.b16 %v307
        %v320 = vunpack.c.l.b16 %v308
        %v321 = vpack.c.b16 %v318, %v317
        %v322 = vpack.c.b16 %v320, %v319
        %vm325 = vcmask 261120
        %v327 = vsel %vm325, %v303, 0
        %v330 = vsel %vm325, %v304, 0
        %332 = vmatpush.bf16.msra.mxu0 0
        %333 = vmatpush.bf16.msra.mxu0 0
        %334 = vmatpush.bf16.msra.mxu0 0
        %335 = vmatpush.bf16.msra.mxu0 0
        %336 = vmatpush.bf16.msra.mxu0 0
        %337 = vmatpush.bf16.msra.mxu0 0
        %338 = vmatpush.bf16.msra.mxu0 %v322
        %339 = vmatpush.bf16.msra.mxu0 %v321
        %340 = vmatmul.bf16.gmra.mxu0 %v327
        %v341 = vpop.f32.mrf.mxu0
        %v342 = vadd.f32 %v311, %v341
        %v343 = vpop.f32.mrf.mxu0
        %v344 = vadd.f32 %v311, %v343
        %345 = vmatmul.bf16.gmra.mxu0 %v330
        %v346 = vpop.f32.mrf.mxu0
        %v347 = vadd.f32 %v311, %v346
        %v348 = vpop.f32.mrf.mxu0
        %v349 = vadd.f32 %v311, %v348
        %350 = vdwg.mxu0
        %vm351 = vcmask 31744
        %352 = vst.msk [vmem:[%s226] sm:$0xff] %vm351, %v342
        %353 = vst.msk [vmem:[%s226 + $0x8] sm:$0xff] %vm351, %v344
        %354 = vst.msk [vmem:[%s226 + $0x10] sm:$0xff] %vm351, %v347
        %355 = vst.msk [vmem:[%s226 + $0x18] sm:$0xff] %vm351, %v349
        %s356 = sand.u32 %s134, 1
        %s357 = sand.u32 %s134, 1
        %s358 = smul.addr %s357, 32
        %s359 = scalar_lea.vmem [#allocation2], %s358
        // Predicated region
        $region41: #{tpu_custom_call.1} parent=39 // pred_check
          %p360 = pneg %p144
        $region42: #{tpu_custom_call.1} parent=39 // pred_check_branch
          %362 = sbr.rel (%p360) target = $region44
        $region43: #{tpu_custom_call.1} parent=39 // pred_region
          %s363 = smul.u32 4, %s16
          %s364 = ssub.s32 7, %s363
          %p365 = scmp.lt.s32.totalorder %s364, 4
          %s366 = scalar_select %p365, %s364, 4
          %s367 = smul.u32 8, %s366
          %p368 = scmp.ne.s32.totalorder 0, %s367
          %s369 = smul.addr %s363, 8
          %s370 = scalar_lea.vmem %s5, %s369
          // Predicated region
          $region45: #{tpu_custom_call.1} parent=43 // pred_check
            %p371 = pneg %p368
          $region46: #{tpu_custom_call.1} parent=43 // pred_check_branch
            %373 = sbr.rel (%p371) target = $region48
          $region47: #{tpu_custom_call.1} parent=43 // pred_region
            // Predicated region
            $region49: #{tpu_custom_call.1} parent=47 // pred_check
              _
            $region50: #{tpu_custom_call.1} parent=47 // pred_check_branch
              %375 = sbr.rel (0) target = $region52
            $region51: #{tpu_custom_call.1} parent=47 // pred_region
              // Predicated region
              $region71: #{tpu_custom_call.1} parent=51 // pred_check
                _
              $region72: #{tpu_custom_call.1} parent=51 // pred_check_branch
                %431 = sbr.rel (0) target = $region74
              $region73: #{tpu_custom_call.1} parent=51 // pred_region
                %s432 = sshrl.u32 %s366, 2
                // While loop
                $region75: #{tpu_custom_call.1} parent=73 // loop_pre_header
                  _
                $region76: #{tpu_custom_call.1} parent=73 // loop_header
                  %s434 = sphi 0, %s436
                  %p435 = scmp.ge.s32.totalorder %s434, %s432
                  %s439 = sphi 0, %s452
                  %s440 = sphi %s359, %s455
                  %s441 = sphi %s370, %s456
                $region77: #{tpu_custom_call.1} parent=73 // loop_header_branch
                  %438 = sbr.rel (%p435) target = $region81
                $region78: #{tpu_custom_call.1} parent=73 // loop_body
                  %v442 = vld [vmem:[%s440] sm:$0xff]
                  %443 = vst [vmem:[%s441] sm:$0xff] %v442
                  %v444 = vld [vmem:[%s440 + $0x8] sm:$0xff]
                  %445 = vst [vmem:[%s441 + $0x8] sm:$0xff] %v444
                  %v446 = vld [vmem:[%s440 + $0x10] sm:$0xff]
                  %447 = vst [vmem:[%s441 + $0x10] sm:$0xff] %v446
                  %v448 = vld [vmem:[%s440 + $0x18] sm:$0xff]
                  %449 = vst [vmem:[%s441 + $0x18] sm:$0xff] %v448
                  %s450 = sadd.s32 1, %s439
                  %p451 = scmp.ge.s32.totalorder %s450, %s432
                  %s452 = scalar_select %p451, 0, %s450
                  %s453 = smul.u32 %s452, 32
                  %s454 = smul.u32 %s452, 32
                  %s455 = scalar_lea.vmem %s359, %s453 [#allocation2]
                  %s456 = scalar_lea.vmem %s370, %s454
                $region79: #{tpu_custom_call.1} parent=73 // loop_footer
                  %s436 = sadd.s32 %s434, 1
                $region80: #{tpu_custom_call.1} parent=73 // loop_footer_branch
                  %433 = sbr.rel target = $region76
                $region81: #{tpu_custom_call.1} parent=73 // loop_exit
                  _
                %s457 = sshrl.u32 %s366, 2
                %s458 = sand.u32 %s366, 3
                %s459 = smul.u32 %s457, 4
                %s460 = smul.u32 8, %s459
                %s461 = scalar_lea.vmem %s359, %s460 [#allocation2]
                %s462 = smul.u32 8, %s459
                %s463 = scalar_lea.vmem %s370, %s462
                // While loop
                $region82: #{tpu_custom_call.1} parent=73 // loop_pre_header
                  _
                $region83: #{tpu_custom_call.1} parent=73 // loop_header
                  %s465 = sphi 0, %s467
                  %p466 = scmp.ge.s32.totalorder %s465, %s458
                  %s470 = sphi 0, %s477
                  %s471 = sphi %s461, %s480
                  %s472 = sphi %s463, %s481
                $region84: #{tpu_custom_call.1} parent=73 // loop_header_branch
                  %469 = sbr.rel (%p466) target = $region88
                $region85: #{tpu_custom_call.1} parent=73 // loop_body
                  %v473 = vld [vmem:[%s471] sm:$0xff]
                  %474 = vst [vmem:[%s472] sm:$0xff] %v473
                  %s475 = sadd.s32 1, %s470
                  %p476 = scmp.ge.s32.totalorder %s475, %s458
                  %s477 = scalar_select %p476, 0, %s475
                  %s478 = smul.u32 %s477, 8
                  %s479 = smul.u32 %s477, 8
                  %s480 = scalar_lea.vmem %s461, %s478 [#allocation2]
                  %s481 = scalar_lea.vmem %s463, %s479
                $region86: #{tpu_custom_call.1} parent=73 // loop_footer
                  %s467 = sadd.s32 %s465, 1
                $region87: #{tpu_custom_call.1} parent=73 // loop_footer_branch
                  %464 = sbr.rel target = $region83
                $region88: #{tpu_custom_call.1} parent=73 // loop_exit
                  _
              $region74: #{tpu_custom_call.1} parent=51 // pred_fallthru
                _
              // Predicated region
              $region89: #{tpu_custom_call.1} parent=51 // pred_check
                _
              $region90: #{tpu_custom_call.1} parent=51 // pred_check_branch
                %483 = sbr.rel target = $region92
              $region91: #{tpu_custom_call.1} parent=51 // pred_region
                _
              $region92: #{tpu_custom_call.1} parent=51 // pred_fallthru
                _
            $region52: #{tpu_custom_call.1} parent=47 // pred_fallthru
              _
            // Predicated region
            $region53: #{tpu_custom_call.1} parent=47 // pred_check
              _
            $region54: #{tpu_custom_call.1} parent=47 // pred_check_branch
              %377 = sbr.rel target = $region56
            $region55: #{tpu_custom_call.1} parent=47 // pred_region
              %s379 = ssub.s32 256, 1
              %s380 = sshrl.u32 %s366, 2
              // While loop
              $region57: #{tpu_custom_call.1} parent=55 // loop_pre_header
                _
              $region58: #{tpu_custom_call.1} parent=55 // loop_header
                %s382 = sphi 0, %s384
                %p383 = scmp.ge.s32.totalorder %s382, %s380
                %s387 = sphi 0, %s400
                %s388 = sphi %s359, %s403
                %s389 = sphi %s370, %s404
              $region59: #{tpu_custom_call.1} parent=55 // loop_header_branch
                %386 = sbr.rel (%p383) target = $region63
              $region60: #{tpu_custom_call.1} parent=55 // loop_body
                %v390 = vld [vmem:[%s388] sm:%s379]
                %391 = vst [vmem:[%s389] sm:%s379] %v390
                %v392 = vld [vmem:[%s388 + $0x8] sm:%s379]
                %393 = vst [vmem:[%s389 + $0x8] sm:%s379] %v392
                %v394 = vld [vmem:[%s388 + $0x10] sm:%s379]
                %395 = vst [vmem:[%s389 + $0x10] sm:%s379] %v394
                %v396 = vld [vmem:[%s388 + $0x18] sm:%s379]
                %397 = vst [vmem:[%s389 + $0x18] sm:%s379] %v396
                %s398 = sadd.s32 1, %s387
                %p399 = scmp.ge.s32.totalorder %s398, %s380
                %s400 = scalar_select %p399, 0, %s398
                %s401 = smul.u32 %s400, 32
                %s402 = smul.u32 %s400, 32
                %s403 = scalar_lea.vmem %s359, %s401 [#allocation2]
                %s404 = scalar_lea.vmem %s370, %s402
              $region61: #{tpu_custom_call.1} parent=55 // loop_footer
                %s384 = sadd.s32 %s382, 1
              $region62: #{tpu_custom_call.1} parent=55 // loop_footer_branch
                %381 = sbr.rel target = $region58
              $region63: #{tpu_custom_call.1} parent=55 // loop_exit
                _
              %s405 = sshrl.u32 %s366, 2
              %s406 = sand.u32 %s366, 3
              %s407 = smul.u32 %s405, 4
              %s408 = smul.u32 8, %s407
              %s409 = scalar_lea.vmem %s359, %s408 [#allocation2]
              %s410 = smul.u32 8, %s407
              %s411 = scalar_lea.vmem %s370, %s410
              // While loop
              $region64: #{tpu_custom_call.1} parent=55 // loop_pre_header
                _
              $region65: #{tpu_custom_call.1} parent=55 // loop_header
                %s413 = sphi 0, %s415
                %p414 = scmp.ge.s32.totalorder %s413, %s406
                %s418 = sphi 0, %s425
                %s419 = sphi %s409, %s428
                %s420 = sphi %s411, %s429
              $region66: #{tpu_custom_call.1} parent=55 // loop_header_branch
                %417 = sbr.rel (%p414) target = $region70
              $region67: #{tpu_custom_call.1} parent=55 // loop_body
                %v421 = vld [vmem:[%s419] sm:%s379]
                %422 = vst [vmem:[%s420] sm:%s379] %v421
                %s423 = sadd.s32 1, %s418
                %p424 = scmp.ge.s32.totalorder %s423, %s406
                %s425 = scalar_select %p424, 0, %s423
                %s426 = smul.u32 %s425, 8
                %s427 = smul.u32 %s425, 8
                %s428 = scalar_lea.vmem %s409, %s426 [#allocation2]
                %s429 = scalar_lea.vmem %s411, %s427
              $region68: #{tpu_custom_call.1} parent=55 // loop_footer
                %s415 = sadd.s32 %s413, 1
              $region69: #{tpu_custom_call.1} parent=55 // loop_footer_branch
                %412 = sbr.rel target = $region65
              $region70: #{tpu_custom_call.1} parent=55 // loop_exit
                _
            $region56: #{tpu_custom_call.1} parent=47 // pred_fallthru
              _
          $region48: #{tpu_custom_call.1} parent=43 // pred_fallthru
            _
          %484 = vnop
        $region44: #{tpu_custom_call.1} parent=39 // pred_fallthru
          _
      $region40: #{tpu_custom_call.1} parent=5 // pred_fallthru
        _
      %p485 = scmp.le.s32.totalorder 2, %s11
      // Predicated region
      $region93: #{tpu_custom_call.1} parent=5 // pred_check
        %p486 = pneg %p485
      $region94: #{tpu_custom_call.1} parent=5 // pred_check_branch
        %488 = sbr.rel (%p486) target = $region96
      $region95: #{tpu_custom_call.1} parent=5 // pred_region
        %s489 = ssub.s32 %s11, 2
        // Predicated region
        $region97: #{tpu_custom_call.1} parent=95 // pred_check
          %p490 = pneg %p150
        $region98: #{tpu_custom_call.1} parent=95 // pred_check_branch
          %492 = sbr.rel (%p490) target = $region100
        $region99: #{tpu_custom_call.1} parent=95 // pred_region
          %s493 = sand.u32 %s135, 1
          %s494 = sand.u32 %s135, 1
          %s495 = smul.addr %s494, 32
          %s496 = scalar_lea.vmem [#allocation2], %s495
        $region100: #{tpu_custom_call.1} parent=95 // pred_fallthru
          _
      $region96: #{tpu_custom_call.1} parent=5 // pred_fallthru
        _
    $region6: #{tpu_custom_call.1} parent=1 // loop_footer
      %s15 = sadd.s32 1, %s11
    $region7: #{tpu_custom_call.1} parent=1 // loop_footer_branch
      %10 = sbr.rel target = $region3
    $region8: #{tpu_custom_call.1} parent=1 // loop_exit
      _

</llo_original>
